<compile_context>
chip_gen: v7x
topology: tpu7x:2x2x1
jax: 0.10.0
libtpu: 0.0.40
codegen_flags: <defaults>
</compile_context>

<pallas_src>
import jax
import jax.numpy as jnp
from jax.experimental import pallas as pl
from jax.experimental.pallas import tpu as pltpu


NEG_SLOPE = 0.01  # torch.nn.LeakyReLU default
N_ACTIONS = 5
HIDDEN = 128
IN_DIM = 4


def _leaky_relu(x):
    return jnp.where(x > 0, x, NEG_SLOPE * x)


def _round_up(a, m):
    return ((a + m - 1) // m) * m


def policy_kernel(
    x_ref,            # (TB, 4)
    w1_ref, b1_ref,   # (4, 128), (1, 128)
    w2_ref, b2_ref,   # (128, 128), (1, 128)
    wh_ref, bh_ref,   # (128, 128), (1, 128)  fused+padded actor|value head
    out_ref,          # (TB, 128) lane-dense head output
):
    x = x_ref[...]
    w1 = w1_ref[...]

    # Layer 1 (M=TB, K=4, N=128): 4 broadcast FMAs on the VPU instead of a
    # sliver MXU matmul (avoids MXU fill/drain for a K=4 contraction).
    acc = x[:, 0:1] * w1[0:1, :]
    acc = acc + x[:, 1:2] * w1[1:2, :]
    acc = acc + x[:, 2:3] * w1[2:3, :]
    acc = acc + x[:, 3:4] * w1[3:4, :]
    h1 = _leaky_relu(acc + b1_ref[...])

    # Layer 2 (128x128) on the MXU, f32 accumulate, f32 epilogue.
    h2 = jnp.dot(h1, w2_ref[...], preferred_element_type=jnp.float32) + b2_ref[...]
    h2 = _leaky_relu(h2)

    # Fused head: columns 0:5 = actor, column 5 = value, rest zero-padded.
    # One lane-dense 128-wide matmul + store instead of two ragged ones.
    out_ref[...] = (
        jnp.dot(h2, wh_ref[...], preferred_element_type=jnp.float32) + bh_ref[...]
    )


def policy_forward(x, params, *, block_b=512):
    """x: (B, 4) float32. Returns (state_values, state_values) like the torch module."""
    B = x.shape[0]
    w1, b1, w2, b2, wv, bv, wa, ba = params

    # Fuse actor (5) and value (1) heads into one lane-dense padded (128,128)
    # weight / (1,128) bias. Under jit these are constant-folded.
    wh = jnp.zeros((HIDDEN, HIDDEN), jnp.float32)
    wh = wh.at[:, :N_ACTIONS].set(wa).at[:, N_ACTIONS:N_ACTIONS + 1].set(wv)
    bh = jnp.zeros((1, HIDDEN), jnp.float32)
    bh = bh.at[:, :N_ACTIONS].set(ba).at[:, N_ACTIONS:N_ACTIONS + 1].set(bv)

    # Batch tiling: TB is a multiple of 8 (f32 sublane); pad B up to a
    # multiple of TB with zero rows, sliced off after the call.
    TB = min(_round_up(block_b, 8), _round_up(B, 8))
    B_pad = _round_up(B, TB)
    if B_pad != B:
        x = jnp.pad(x, ((0, B_pad - B), (0, 0)))
    grid = (B_pad // TB,)

    pin = lambda i: (0, 0)  # weights resident across all grid steps
    out = pl.pallas_call(
        policy_kernel,
        out_shape=jax.ShapeDtypeStruct((B_pad, HIDDEN), jnp.float32),
        grid=grid,
        in_specs=[
            pl.BlockSpec((TB, IN_DIM), lambda i: (i, 0)),        # x streams
            pl.BlockSpec((IN_DIM, HIDDEN), pin),                 # w1
            pl.BlockSpec((1, HIDDEN), pin),                      # b1
            pl.BlockSpec((HIDDEN, HIDDEN), pin),                 # w2
            pl.BlockSpec((1, HIDDEN), pin),                      # b2
            pl.BlockSpec((HIDDEN, HIDDEN), pin),                 # wh (fused head)
            pl.BlockSpec((1, HIDDEN), pin),                      # bh
        ],
        out_specs=pl.BlockSpec((TB, HIDDEN), lambda i: (i, 0)),  # lane-dense out
        compiler_params=pltpu.CompilerParams(
            dimension_semantics=("parallel",),
        ),
    )(x, w1, b1, w2, b2, wh, bh)

    actor = out[:B, :N_ACTIONS]
    # Reference module returns (state_values, state_values) where state_values
    # was overwritten with the actor-head output.
    return actor, actor


def init_params(key):
    """Deterministic parameter init matching torch Linear shapes (stored transposed)."""
    ks = jax.random.split(key, 8)

    def lin(kw, kb, fan_in, fan_out):
        bound = 1.0 / jnp.sqrt(fan_in)
        w = jax.random.uniform(kw, (fan_in, fan_out), jnp.float32, -bound, bound)
        b = jax.random.uniform(kb, (1, fan_out), jnp.float32, -bound, bound)
        return w, b

    w1, b1 = lin(ks[0], ks[1], IN_DIM, HIDDEN)
    w2, b2 = lin(ks[2], ks[3], HIDDEN, HIDDEN)
    wv, bv = lin(ks[4], ks[5], HIDDEN, 1)
    wa, ba = lin(ks[6], ks[7], HIDDEN, N_ACTIONS)
    return (w1, b1, w2, b2, wv, bv, wa, ba)


def _ref_forward(x, params):
    """Pure-JAX reference for correctness check."""
    w1, b1, w2, b2, wv, bv, wa, ba = params
    h = _leaky_relu(x @ w1 + b1)
    h = _leaky_relu(h @ w2 + b2)
    a = h @ wa + ba
    return a, a


if __name__ == "__main__":
    key = jax.random.PRNGKey(0)
    kp, kx, kx2 = jax.random.split(key, 3)
    params = init_params(kp)

    # Small-batch single-block path.
    B = 8
    x = jax.random.normal(kx, (B, IN_DIM), jnp.float32)
    out0, out1 = policy_forward(x, params)
    jax.block_until_ready((out0, out1))
    ref0, _ = _ref_forward(x, params)
    assert out0.shape == (B, N_ACTIONS) and out1.shape == (B, N_ACTIONS)
    assert jnp.allclose(out0, ref0, atol=1e-5, rtol=1e-5)
    assert jnp.allclose(out0, out1)

    # Multi-step parallel batch grid path (with batch padding).
    B2 = 40
    x2 = jax.random.normal(kx2, (B2, IN_DIM), jnp.float32)
    g0, g1 = policy_forward(x2, params, block_b=16)
    jax.block_until_ready((g0, g1))
    gref, _ = _ref_forward(x2, params)
    assert g0.shape == (B2, N_ACTIONS)
    assert jnp.allclose(g0, gref, atol=1e-5, rtol=1e-5)
    assert jnp.allclose(g0, g1)

    print("KERNEL_OK")
</pallas_src>

<mosaic_0001>
module attributes {stable_mosaic.version = 11 : i64} {
  func.func @policy_kernel(%arg0: i32, %arg1: memref<8x4xf32, #tpu.memory_space<vmem>>, %arg2: memref<4x128xf32, #tpu.memory_space<vmem>>, %arg3: memref<1x128xf32, #tpu.memory_space<vmem>>, %arg4: memref<128x128xf32, #tpu.memory_space<vmem>>, %arg5: memref<1x128xf32, #tpu.memory_space<vmem>>, %arg6: memref<128x128xf32, #tpu.memory_space<vmem>>, %arg7: memref<1x128xf32, #tpu.memory_space<vmem>>, %arg8: memref<8x128xf32, #tpu.memory_space<vmem>>) attributes {dimension_semantics = [#tpu.dimension_semantics<parallel>], iteration_bounds = array<i64: 1>, scalar_prefetch = 0 : i64, scratch_operands = 0 : i64, tpu.core_type = #tpu.core_type<tc>, window_params = [{transform_indices = @transform_0, window_bounds = array<i64: 8, 4>}, {pipeline_mode = #tpu.pipeline_mode<synchronous>, transform_indices = @transform_1, window_bounds = array<i64: 4, 128>}, {pipeline_mode = #tpu.pipeline_mode<synchronous>, transform_indices = @transform_2, window_bounds = array<i64: 1, 128>}, {pipeline_mode = #tpu.pipeline_mode<synchronous>, transform_indices = @transform_3, window_bounds = array<i64: 128, 128>}, {pipeline_mode = #tpu.pipeline_mode<synchronous>, transform_indices = @transform_4, window_bounds = array<i64: 1, 128>}, {pipeline_mode = #tpu.pipeline_mode<synchronous>, transform_indices = @transform_5, window_bounds = array<i64: 128, 128>}, {pipeline_mode = #tpu.pipeline_mode<synchronous>, transform_indices = @transform_6, window_bounds = array<i64: 1, 128>}, {transform_indices = @transform_7, window_bounds = array<i64: 8, 128>}]} {
    %c0 = arith.constant 0 : index
    %c0_0 = arith.constant 0 : index
    %0 = vector.load %arg1[%c0, %c0_0] : memref<8x4xf32, #tpu.memory_space<vmem>>, vector<8x4xf32>
    %c0_1 = arith.constant 0 : index
    %c0_2 = arith.constant 0 : index
    %1 = vector.load %arg2[%c0_1, %c0_2] : memref<4x128xf32, #tpu.memory_space<vmem>>, vector<4x128xf32>
    %2 = vector.extract_strided_slice %0 {offsets = [0, 0], sizes = [8, 1], strides = [1, 1]} : vector<8x4xf32> to vector<8x1xf32>
    %3 = vector.extract_strided_slice %1 {offsets = [0, 0], sizes = [1, 128], strides = [1, 1]} : vector<4x128xf32> to vector<1x128xf32>
    %4 = vector.broadcast %2 : vector<8x1xf32> to vector<8x128xf32>
    %5 = vector.broadcast %3 : vector<1x128xf32> to vector<8x128xf32>
    %6 = arith.mulf %4, %5 : vector<8x128xf32>
    %7 = vector.extract_strided_slice %0 {offsets = [0, 1], sizes = [8, 1], strides = [1, 1]} : vector<8x4xf32> to vector<8x1xf32>
    %8 = vector.extract_strided_slice %1 {offsets = [1, 0], sizes = [1, 128], strides = [1, 1]} : vector<4x128xf32> to vector<1x128xf32>
    %9 = vector.broadcast %7 : vector<8x1xf32> to vector<8x128xf32>
    %10 = vector.broadcast %8 : vector<1x128xf32> to vector<8x128xf32>
    %11 = arith.mulf %9, %10 : vector<8x128xf32>
    %12 = arith.addf %6, %11 : vector<8x128xf32>
    %13 = vector.extract_strided_slice %0 {offsets = [0, 2], sizes = [8, 1], strides = [1, 1]} : vector<8x4xf32> to vector<8x1xf32>
    %14 = vector.extract_strided_slice %1 {offsets = [2, 0], sizes = [1, 128], strides = [1, 1]} : vector<4x128xf32> to vector<1x128xf32>
    %15 = vector.broadcast %13 : vector<8x1xf32> to vector<8x128xf32>
    %16 = vector.broadcast %14 : vector<1x128xf32> to vector<8x128xf32>
    %17 = arith.mulf %15, %16 : vector<8x128xf32>
    %18 = arith.addf %12, %17 : vector<8x128xf32>
    %19 = vector.extract_strided_slice %0 {offsets = [0, 3], sizes = [8, 1], strides = [1, 1]} : vector<8x4xf32> to vector<8x1xf32>
    %20 = vector.extract_strided_slice %1 {offsets = [3, 0], sizes = [1, 128], strides = [1, 1]} : vector<4x128xf32> to vector<1x128xf32>
    %21 = vector.broadcast %19 : vector<8x1xf32> to vector<8x128xf32>
    %22 = vector.broadcast %20 : vector<1x128xf32> to vector<8x128xf32>
    %23 = arith.mulf %21, %22 : vector<8x128xf32>
    %24 = arith.addf %18, %23 : vector<8x128xf32>
    %c0_3 = arith.constant 0 : index
    %c0_4 = arith.constant 0 : index
    %25 = vector.load %arg3[%c0_3, %c0_4] : memref<1x128xf32, #tpu.memory_space<vmem>>, vector<1x128xf32>
    %26 = vector.broadcast %25 : vector<1x128xf32> to vector<8x128xf32>
    %27 = arith.addf %24, %26 : vector<8x128xf32>
    %cst = arith.constant 0.000000e+00 : f32
    %28 = vector.broadcast %cst : f32 to vector<8x128xf32>
    %29 = arith.cmpf ogt, %27, %28 : vector<8x128xf32>
    %cst_5 = arith.constant 0.00999999977 : f32
    %30 = vector.broadcast %cst_5 : f32 to vector<8x128xf32>
    %31 = arith.mulf %30, %27 : vector<8x128xf32>
    %32 = arith.select %29, %27, %31 : vector<8x128xi1>, vector<8x128xf32>
    %c0_6 = arith.constant 0 : index
    %c0_7 = arith.constant 0 : index
    %33 = vector.load %arg4[%c0_6, %c0_7] : memref<128x128xf32, #tpu.memory_space<vmem>>, vector<128x128xf32>
    %cst_8 = arith.constant dense<0.000000e+00> : vector<8x128xf32>
    %34 = tpu.matmul %32, %33, %cst_8 {dimension_numbers = #tpu.dot_dimension_numbers<[1], [0], [0], [1], [0, 0, 1, 1], [], []>} : vector<8x128xf32>, vector<128x128xf32>, vector<8x128xf32> -> vector<8x128xf32>
    %c0_9 = arith.constant 0 : index
    %c0_10 = arith.constant 0 : index
    %35 = vector.load %arg5[%c0_9, %c0_10] : memref<1x128xf32, #tpu.memory_space<vmem>>, vector<1x128xf32>
    %36 = vector.broadcast %35 : vector<1x128xf32> to vector<8x128xf32>
    %37 = arith.addf %34, %36 : vector<8x128xf32>
    %cst_11 = arith.constant 0.000000e+00 : f32
    %38 = vector.broadcast %cst_11 : f32 to vector<8x128xf32>
    %39 = arith.cmpf ogt, %37, %38 : vector<8x128xf32>
    %cst_12 = arith.constant 0.00999999977 : f32
    %40 = vector.broadcast %cst_12 : f32 to vector<8x128xf32>
    %41 = arith.mulf %40, %37 : vector<8x128xf32>
    %42 = arith.select %39, %37, %41 : vector<8x128xi1>, vector<8x128xf32>
    %c0_13 = arith.constant 0 : index
    %c0_14 = arith.constant 0 : index
    %43 = vector.load %arg6[%c0_13, %c0_14] : memref<128x128xf32, #tpu.memory_space<vmem>>, vector<128x128xf32>
    %cst_15 = arith.constant dense<0.000000e+00> : vector<8x128xf32>
    %44 = tpu.matmul %42, %43, %cst_15 {dimension_numbers = #tpu.dot_dimension_numbers<[1], [0], [0], [1], [0, 0, 1, 1], [], []>} : vector<8x128xf32>, vector<128x128xf32>, vector<8x128xf32> -> vector<8x128xf32>
    %c0_16 = arith.constant 0 : index
    %c0_17 = arith.constant 0 : index
    %45 = vector.load %arg7[%c0_16, %c0_17] : memref<1x128xf32, #tpu.memory_space<vmem>>, vector<1x128xf32>
    %46 = vector.broadcast %45 : vector<1x128xf32> to vector<8x128xf32>
    %47 = arith.addf %44, %46 : vector<8x128xf32>
    %c0_18 = arith.constant 0 : index
    %c0_19 = arith.constant 0 : index
    %48 = vector.load %arg8[%c0_18, %c0_19] : memref<8x128xf32, #tpu.memory_space<vmem>>, vector<8x128xf32>
    tpu.vector_store %arg8[%c0_18, %c0_19], %47 {strides = array<i32>} : memref<8x128xf32, #tpu.memory_space<vmem>>, vector<8x128xf32>,
    return
  }
  func.func @transform_0(%arg0: i32) -> (i32, i32) {
    %c0_i32 = arith.constant 0 : i32
    %c0_i32_0 = arith.constant 0 : i32
    return %arg0, %c0_i32 : i32, i32
  }
  func.func @transform_1(%arg0: i32) -> (i32, i32) {
    %c0_i32 = arith.constant 0 : i32
    %c0_i32_0 = arith.constant 0 : i32
    %c0_i32_1 = arith.constant 0 : i32
    return %c0_i32, %c0_i32_0 : i32, i32
  }
  func.func @transform_2(%arg0: i32) -> (i32, i32) {
    %c0_i32 = arith.constant 0 : i32
    %c0_i32_0 = arith.constant 0 : i32
    %c0_i32_1 = arith.constant 0 : i32
    return %c0_i32, %c0_i32_0 : i32, i32
  }
  func.func @transform_3(%arg0: i32) -> (i32, i32) {
    %c0_i32 = arith.constant 0 : i32
    %c0_i32_0 = arith.constant 0 : i32
    %c0_i32_1 = arith.constant 0 : i32
    return %c0_i32, %c0_i32_0 : i32, i32
  }
  func.func @transform_4(%arg0: i32) -> (i32, i32) {
    %c0_i32 = arith.constant 0 : i32
    %c0_i32_0 = arith.constant 0 : i32
    %c0_i32_1 = arith.constant 0 : i32
    return %c0_i32, %c0_i32_0 : i32, i32
  }
  func.func @transform_5(%arg0: i32) -> (i32, i32) {
    %c0_i32 = arith.constant 0 : i32
    %c0_i32_0 = arith.constant 0 : i32
    %c0_i32_1 = arith.constant 0 : i32
    return %c0_i32, %c0_i32_0 : i32, i32
  }
  func.func @transform_6(%arg0: i32) -> (i32, i32) {
    %c0_i32 = arith.constant 0 : i32
    %c0_i32_0 = arith.constant 0 : i32
    %c0_i32_1 = arith.constant 0 : i32
    return %c0_i32, %c0_i32_0 : i32, i32
  }
  func.func @transform_7(%arg0: i32) -> (i32, i32) {
    %c0_i32 = arith.constant 0 : i32
    %c0_i32_0 = arith.constant 0 : i32
    return %arg0, %c0_i32 : i32, i32
  }
}

</mosaic_0001>

<llo_original>
// kernel: tpu_custom_call.1
$region0: #{tpu_custom_call.1}
  #allocation0 [shape = 'u32[]', space=smem, size = 0x4, offset = 0x4, fixed_abs, tag = 'smem constant byte address 0x4 - core index']
  #allocation1 [shape = 'u32[144,128]{1,0:T(1,128)}', space=vmem, size = 0x12000, scoped, tag = 'internal scratch']
  %s0 = inlined_call_operand.vmem [shape: f32[8,4], index: 0, kind: input, shape index: {}]
  %s1 = inlined_call_operand.vmem [shape: f32[4,128], index: 1, kind: input, shape index: {}]
  %s2 = inlined_call_operand.vmem [shape: f32[1,128], index: 2, kind: input, shape index: {}]
  %s3 = inlined_call_operand.hbm [shape: f32[128,128], index: 3, kind: input, shape index: {}]
  %s4 = inlined_call_operand.vmem [shape: f32[1,128], index: 4, kind: input, shape index: {}]
  %s5 = inlined_call_operand.hbm [shape: f32[128,128], index: 5, kind: input, shape index: {}]
  %s6 = inlined_call_operand.vmem [shape: f32[1,128], index: 6, kind: input, shape index: {}]
  %s7 = inlined_call_operand.hbm [shape: f32[8,128], index: 7, kind: output, shape index: {}]
  %s8 = sld [smem:[#allocation0]]
  $region46: #{tpu_custom_call.1} parent=0
    _
  %s10 = ssub.s32 1, %s8
  %s11 = scalar_select 0, %s10, %s8
  $region1: #{tpu_custom_call.1} parent=0
    #allocation2 [shape = 'u8[65536]{0}', space=vmem, size = 0x10000, scoped, tag = 'input window, operand 3, single buffered']
    #allocation3 [shape = 's32[1]{0}', space=sflag, size = 0x4, scoped, tag = 'scoped memory for tpu_custom_call.1']
    #allocation4 [shape = 's32[1]{0}', space=sflag, size = 0x4, scoped, tag = 'scoped memory for tpu_custom_call.1']
    #allocation5 [shape = 'u8[65536]{0}', space=vmem, size = 0x10000, scoped, tag = 'input window, operand 5, single buffered']
    #allocation6 [shape = 's32[1]{0}', space=sflag, size = 0x4, scoped, tag = 'scoped memory for tpu_custom_call.1']
    #allocation7 [shape = 'u8[4096]{0}', space=vmem, size = 0x1000, scoped, tag = 'output window, operand 0, single buffered']
    %12 = vsyncpa [#allocation3], 0
    %13 = vsyncpa [#allocation6], 0
    %14 = vsyncpa [#allocation4], 0
    // Predicated region
    $region2: #{tpu_custom_call.1} parent=1 // pred_check
      _
    $region3: #{tpu_custom_call.1} parent=1 // pred_check_branch
      %16 = sbr.rel (0) target = $region5
    $region4: #{tpu_custom_call.1} parent=1 // pred_region
      _
    $region5: #{tpu_custom_call.1} parent=1 // pred_fallthru
      _
    // Predicated region
    $region6: #{tpu_custom_call.1} parent=1 // pred_check
      _
    $region7: #{tpu_custom_call.1} parent=1 // pred_check_branch
      %18 = sbr.rel (0) target = $region9
    $region8: #{tpu_custom_call.1} parent=1 // pred_region
      _
    $region9: #{tpu_custom_call.1} parent=1 // pred_fallthru
      _
    // Predicated region
    $region10: #{tpu_custom_call.1} parent=1 // pred_check
      _
    $region11: #{tpu_custom_call.1} parent=1 // pred_check_branch
      %20 = sbr.rel (0) target = $region13
    $region12: #{tpu_custom_call.1} parent=1 // pred_region
      _
    $region13: #{tpu_custom_call.1} parent=1 // pred_fallthru
      _
    // Predicated region
    $region14: #{tpu_custom_call.1} parent=1 // pred_check
      _
    $region15: #{tpu_custom_call.1} parent=1 // pred_check_branch
      %22 = sbr.rel (0) target = $region17
    $region16: #{tpu_custom_call.1} parent=1 // pred_region
      %s24 = ssub.s32 2048, 2048
      %25 = vsyncadd [#allocation3], %s24
      %s26 = sshll.u32 [#allocation2], 4
      %s27 = int_to_ptr.vmem [resolvable:$true] %s26
      %32 = dma.hbm_to_vmem [thread:$0]  %s3, 2048, %s27, [#allocation3], 128, 128, 8
    $region17: #{tpu_custom_call.1} parent=1 // pred_fallthru
      _
    // Predicated region
    $region18: #{tpu_custom_call.1} parent=1 // pred_check
      _
    $region19: #{tpu_custom_call.1} parent=1 // pred_check_branch
      %34 = sbr.rel (0) target = $region21
    $region20: #{tpu_custom_call.1} parent=1 // pred_region
      _
    $region21: #{tpu_custom_call.1} parent=1 // pred_fallthru
      _
    // Predicated region
    $region22: #{tpu_custom_call.1} parent=1 // pred_check
      _
    $region23: #{tpu_custom_call.1} parent=1 // pred_check_branch
      %36 = sbr.rel (0) target = $region25
    $region24: #{tpu_custom_call.1} parent=1 // pred_region
      %s38 = ssub.s32 2048, 2048
      %39 = vsyncadd [#allocation6], %s38
      %s40 = sshll.u32 [#allocation5], 4
      %s41 = int_to_ptr.vmem [resolvable:$true] %s40
      %46 = dma.hbm_to_vmem [thread:$0]  %s5, 2048, %s41, [#allocation6], 128, 128, 8
    $region25: #{tpu_custom_call.1} parent=1 // pred_fallthru
      _
    // Predicated region
    $region26: #{tpu_custom_call.1} parent=1 // pred_check
      _
    $region27: #{tpu_custom_call.1} parent=1 // pred_check_branch
      %48 = sbr.rel (0) target = $region29
    $region28: #{tpu_custom_call.1} parent=1 // pred_region
      _
    $region29: #{tpu_custom_call.1} parent=1 // pred_fallthru
      _
    // Predicated region
    $region30: #{tpu_custom_call.1} parent=1 // pred_check
      _
    $region31: #{tpu_custom_call.1} parent=1 // pred_check_branch
      %50 = sbr.rel (0) target = $region33
    $region32: #{tpu_custom_call.1} parent=1 // pred_region
      %51 = dma.done [#allocation3], 2048
    $region33: #{tpu_custom_call.1} parent=1 // pred_fallthru
      _
    // Predicated region
    $region34: #{tpu_custom_call.1} parent=1 // pred_check
      _
    $region35: #{tpu_custom_call.1} parent=1 // pred_check_branch
      %53 = sbr.rel (0) target = $region37
    $region36: #{tpu_custom_call.1} parent=1 // pred_region
      %54 = dma.done [#allocation6], 2048
    $region37: #{tpu_custom_call.1} parent=1 // pred_fallthru
      _
    %v55 = vld [vmem:[%s0] sm:$0xff]
    %v56 = vld [vmem:[%s1] sm:$0xf]
    %58 = vset.pattern.permute.xlu0 0
    %59 = vperm.xlu0 %58, %v55
    %v60 = vpop.permute.xlu0 %59
    %v62 = vlaneseq
    %v63 = vshrl.u32 %v62, 7
    %v64 = vsub.s32 0, %v63
    %v65 = vrot.slane %v56, %v64
    %v66 = vmul.f32 %v60, %v65
    %67 = vset.pattern.permute.xlu0 1
    %68 = vperm.xlu0 %67, %v55
    %v69 = vpop.permute.xlu0 %68
    %v71 = vlaneseq
    %v72 = vshrl.u32 %v71, 7
    %v73 = vsub.s32 1, %v72
    %v74 = vrot.slane %v56, %v73
    %v75 = vmul.f32 %v69, %v74
    %v76 = vadd.f32 %v66, %v75
    %77 = vset.pattern.permute.xlu0 2
    %78 = vperm.xlu0 %77, %v55
    %v79 = vpop.permute.xlu0 %78
    %v81 = vlaneseq
    %v82 = vshrl.u32 %v81, 7
    %v83 = vsub.s32 2, %v82
    %v84 = vrot.slane %v56, %v83
    %v85 = vmul.f32 %v79, %v84
    %v86 = vadd.f32 %v76, %v85
    %87 = vset.pattern.permute.xlu0 3
    %88 = vperm.xlu0 %87, %v55
    %v89 = vpop.permute.xlu0 %88
    %v91 = vlaneseq
    %v92 = vshrl.u32 %v91, 7
    %v93 = vsub.s32 3, %v92
    %v94 = vrot.slane %v56, %v93
    %v95 = vmul.f32 %v89, %v94
    %v96 = vadd.f32 %v86, %v95
    %v97 = vld [vmem:[%s2] sm:$0x1]
    %v99 = vlaneseq
    %v100 = vshrl.u32 %v99, 7
    %v101 = vsub.s32 0, %v100
    %v102 = vrot.slane %v97, %v101
    %v104 = vadd.f32 %v96, %v102
    %vm105 = vcmp.gt.f32.partialorder %v104, 0.0
    %v106 = vmul.f32 %v104, 0.01
    %v107 = vsel %vm105, %v104, %v106
    %v108 = vld [vmem:[#allocation2] sm:$0xff]
    %v109 = vld [vmem:[#allocation2 + $0x8] sm:$0xff]
    %v110 = vld [vmem:[#allocation2 + $0x10] sm:$0xff]
    %v111 = vld [vmem:[#allocation2 + $0x18] sm:$0xff]
    %v112 = vld [vmem:[#allocation2 + $0x20] sm:$0xff]
    %v113 = vld [vmem:[#allocation2 + $0x28] sm:$0xff]
    %v114 = vld [vmem:[#allocation2 + $0x30] sm:$0xff]
    %v115 = vld [vmem:[#allocation2 + $0x38] sm:$0xff]
    %v116 = vld [vmem:[#allocation2 + $0x40] sm:$0xff]
    %v117 = vld [vmem:[#allocation2 + $0x48] sm:$0xff]
    %v118 = vld [vmem:[#allocation2 + $0x50] sm:$0xff]
    %v119 = vld [vmem:[#allocation2 + $0x58] sm:$0xff]
    %v120 = vld [vmem:[#allocation2 + $0x60] sm:$0xff]
    %v121 = vld [vmem:[#allocation2 + $0x68] sm:$0xff]
    %v122 = vld [vmem:[#allocation2 + $0x70] sm:$0xff]
    %v123 = vld [vmem:[#allocation2 + $0x78] sm:$0xff]
    %v124 = vld [vmem:[%s4] sm:$0x1]
    %v126 = vlaneseq
    %v127 = vshrl.u32 %v126, 7
    %v128 = vsub.s32 0, %v127
    %v129 = vrot.slane %v124, %v128
    %131 = vmatprep.subr.mxu0 0.0
    %132 = vmatpush1.msra.mxu0 %v108
    %133 = vmatprep.subr.mxu0 0.0
    %134 = vmatpush1.msra.mxu0 %v109
    %135 = vmatprep.subr.mxu0 0.0
    %136 = vmatpush1.msra.mxu0 %v110
    %137 = vmatprep.subr.mxu0 0.0
    %138 = vmatpush1.msra.mxu0 %v111
    %139 = vmatprep.subr.mxu0 0.0
    %140 = vmatpush1.msra.mxu0 %v112
    %141 = vmatprep.subr.mxu0 0.0
    %142 = vmatpush1.msra.mxu0 %v113
    %143 = vmatprep.subr.mxu0 0.0
    %144 = vmatpush1.msra.mxu0 %v114
    %145 = vmatprep.subr.mxu0 0.0
    %146 = vmatpush1.msra.mxu0 %v115
    %147 = vmatprep.subr.mxu0 0.0
    %148 = vmatpush1.msra.mxu0 %v116
    %149 = vmatprep.subr.mxu0 0.0
    %150 = vmatpush1.msra.mxu0 %v117
    %151 = vmatprep.subr.mxu0 0.0
    %152 = vmatpush1.msra.mxu0 %v118
    %153 = vmatprep.subr.mxu0 0.0
    %154 = vmatpush1.msra.mxu0 %v119
    %155 = vmatprep.subr.mxu0 0.0
    %156 = vmatpush1.msra.mxu0 %v120
    %157 = vmatprep.subr.mxu0 0.0
    %158 = vmatpush1.msra.mxu0 %v121
    %159 = vmatprep.subr.mxu0 0.0
    %160 = vmatpush1.msra.mxu0 %v122
    %161 = vmatprep.subr.mxu0 0.0
    %162 = vmatpush1.msra.mxu0 %v123
    %163 = vmatprep.subr.mxu0 0.0
    %164 = vmatpush1.msra.mxu0 0.0
    %165 = vmatprep.subr.mxu0 0.0
    %166 = vmatpush1.msra.mxu0 0.0
    %167 = vmatprep.subr.mxu0 0.0
    %168 = vmatpush1.msra.mxu0 0.0
    %169 = vmatprep.subr.mxu0 0.0
    %170 = vmatpush1.msra.mxu0 0.0
    %171 = vmatprep.subr.mxu0 0.0
    %172 = vmatpush1.msra.mxu0 0.0
    %173 = vmatprep.subr.mxu0 0.0
    %174 = vmatpush1.msra.mxu0 0.0
    %175 = vmatprep.subr.mxu0 0.0
    %176 = vmatpush1.msra.mxu0 0.0
    %177 = vmatprep.subr.mxu0 0.0
    %178 = vmatpush1.msra.mxu0 0.0
    %179 = vmatprep.subr.mxu0 0.0
    %180 = vmatpush1.msra.mxu0 0.0
    %181 = vmatprep.subr.mxu0 0.0
    %182 = vmatpush1.msra.mxu0 0.0
    %183 = vmatprep.subr.mxu0 0.0
    %184 = vmatpush1.msra.mxu0 0.0
    %185 = vmatprep.subr.mxu0 0.0
    %186 = vmatpush1.msra.mxu0 0.0
    %187 = vmatprep.subr.mxu0 0.0
    %188 = vmatpush1.msra.mxu0 0.0
    %189 = vmatprep.subr.mxu0 0.0
    %190 = vmatpush1.msra.mxu0 0.0
    %191 = vmatprep.subr.mxu0 0.0
    %192 = vmatpush1.msra.mxu0 0.0
    %193 = vmatprep.subr.mxu0 0.0
    %194 = vmatpush1.msra.mxu0 0.0
    %195 = vmatprep.mubr.f32.mxu0 0.0
    %196 = vmatmul.mubr.f32.gmra.mrb[0].mxu0 %v107
    %v197 = vpop.f32.mrb[0].mxu0
    %v198 = vadd.f32 %v129, %v197
    %v199 = vpop.f32.mrb[0].mxu0
    %200 = vdwg.mxu0
    %vm201 = vcmp.gt.f32.partialorder %v198, 0.0
    %v202 = vmul.f32 %v198, 0.01
    %v203 = vsel %vm201, %v198, %v202
    %v204 = vld [vmem:[#allocation5] sm:$0xff]
    %v205 = vld [vmem:[#allocation5 + $0x8] sm:$0xff]
    %v206 = vld [vmem:[#allocation5 + $0x10] sm:$0xff]
    %v207 = vld [vmem:[#allocation5 + $0x18] sm:$0xff]
    %v208 = vld [vmem:[#allocation5 + $0x20] sm:$0xff]
    %v209 = vld [vmem:[#allocation5 + $0x28] sm:$0xff]
    %v210 = vld [vmem:[#allocation5 + $0x30] sm:$0xff]
    %v211 = vld [vmem:[#allocation5 + $0x38] sm:$0xff]
    %v212 = vld [vmem:[#allocation5 + $0x40] sm:$0xff]
    %v213 = vld [vmem:[#allocation5 + $0x48] sm:$0xff]
    %v214 = vld [vmem:[#allocation5 + $0x50] sm:$0xff]
    %v215 = vld [vmem:[#allocation5 + $0x58] sm:$0xff]
    %v216 = vld [vmem:[#allocation5 + $0x60] sm:$0xff]
    %v217 = vld [vmem:[#allocation5 + $0x68] sm:$0xff]
    %v218 = vld [vmem:[#allocation5 + $0x70] sm:$0xff]
    %v219 = vld [vmem:[#allocation5 + $0x78] sm:$0xff]
    %v220 = vld [vmem:[%s6] sm:$0x1]
    %v222 = vlaneseq
    %v223 = vshrl.u32 %v222, 7
    %v224 = vsub.s32 0, %v223
    %v225 = vrot.slane %v220, %v224
    %227 = vmatprep.subr.mxu0 0.0
    %228 = vmatpush1.msra.mxu0 %v204
    %229 = vmatprep.subr.mxu0 0.0
    %230 = vmatpush1.msra.mxu0 %v205
    %231 = vmatprep.subr.mxu0 0.0
    %232 = vmatpush1.msra.mxu0 %v206
    %233 = vmatprep.subr.mxu0 0.0
    %234 = vmatpush1.msra.mxu0 %v207
    %235 = vmatprep.subr.mxu0 0.0
    %236 = vmatpush1.msra.mxu0 %v208
    %237 = vmatprep.subr.mxu0 0.0
    %238 = vmatpush1.msra.mxu0 %v209
    %239 = vmatprep.subr.mxu0 0.0
    %240 = vmatpush1.msra.mxu0 %v210
    %241 = vmatprep.subr.mxu0 0.0
    %242 = vmatpush1.msra.mxu0 %v211
    %243 = vmatprep.subr.mxu0 0.0
    %244 = vmatpush1.msra.mxu0 %v212
    %245 = vmatprep.subr.mxu0 0.0
    %246 = vmatpush1.msra.mxu0 %v213
    %247 = vmatprep.subr.mxu0 0.0
    %248 = vmatpush1.msra.mxu0 %v214
    %249 = vmatprep.subr.mxu0 0.0
    %250 = vmatpush1.msra.mxu0 %v215
    %251 = vmatprep.subr.mxu0 0.0
    %252 = vmatpush1.msra.mxu0 %v216
    %253 = vmatprep.subr.mxu0 0.0
    %254 = vmatpush1.msra.mxu0 %v217
    %255 = vmatprep.subr.mxu0 0.0
    %256 = vmatpush1.msra.mxu0 %v218
    %257 = vmatprep.subr.mxu0 0.0
    %258 = vmatpush1.msra.mxu0 %v219
    %259 = vmatprep.subr.mxu0 0.0
    %260 = vmatpush1.msra.mxu0 0.0
    %261 = vmatprep.subr.mxu0 0.0
    %262 = vmatpush1.msra.mxu0 0.0
    %263 = vmatprep.subr.mxu0 0.0
    %264 = vmatpush1.msra.mxu0 0.0
    %265 = vmatprep.subr.mxu0 0.0
    %266 = vmatpush1.msra.mxu0 0.0
    %267 = vmatprep.subr.mxu0 0.0
    %268 = vmatpush1.msra.mxu0 0.0
    %269 = vmatprep.subr.mxu0 0.0
    %270 = vmatpush1.msra.mxu0 0.0
    %271 = vmatprep.subr.mxu0 0.0
    %272 = vmatpush1.msra.mxu0 0.0
    %273 = vmatprep.subr.mxu0 0.0
    %274 = vmatpush1.msra.mxu0 0.0
    %275 = vmatprep.subr.mxu0 0.0
    %276 = vmatpush1.msra.mxu0 0.0
    %277 = vmatprep.subr.mxu0 0.0
    %278 = vmatpush1.msra.mxu0 0.0
    %279 = vmatprep.subr.mxu0 0.0
    %280 = vmatpush1.msra.mxu0 0.0
    %281 = vmatprep.subr.mxu0 0.0
    %282 = vmatpush1.msra.mxu0 0.0
    %283 = vmatprep.subr.mxu0 0.0
    %284 = vmatpush1.msra.mxu0 0.0
    %285 = vmatprep.subr.mxu0 0.0
    %286 = vmatpush1.msra.mxu0 0.0
    %287 = vmatprep.subr.mxu0 0.0
    %288 = vmatpush1.msra.mxu0 0.0
    %289 = vmatprep.subr.mxu0 0.0
    %290 = vmatpush1.msra.mxu0 0.0
    %291 = vmatprep.mubr.f32.mxu0 0.0
    %292 = vmatmul.mubr.f32.gmra.mrb[0].mxu0 %v203
    %v293 = vpop.f32.mrb[0].mxu0
    %v294 = vadd.f32 %v225, %v293
    %v295 = vpop.f32.mrb[0].mxu0
    %296 = vdwg.mxu0
    %297 = vst [vmem:[#allocation7] sm:$0xff] %v294
    // Predicated region
    $region38: #{tpu_custom_call.1} parent=1 // pred_check
      _
    $region39: #{tpu_custom_call.1} parent=1 // pred_check_branch
      %299 = sbr.rel (0) target = $region41
    $region40: #{tpu_custom_call.1} parent=1 // pred_region
      %s301 = ssub.s32 128, 128
      %302 = vsyncadd [#allocation4], %s301
      %s304 = sshll.u32 [#allocation7], 4
      %s305 = int_to_ptr.vmem [resolvable:$true] %s304
      %307 = dma.vmem_to_hbm [thread:$0]  %s305, 128, %s7, [#allocation4]
    $region41: #{tpu_custom_call.1} parent=1 // pred_fallthru
      _
    // Predicated region
    $region42: #{tpu_custom_call.1} parent=1 // pred_check
      _
    $region43: #{tpu_custom_call.1} parent=1 // pred_check_branch
      %309 = sbr.rel (0) target = $region45
    $region44: #{tpu_custom_call.1} parent=1 // pred_region
      %310 = dma.done [#allocation4], 128
    $region45: #{tpu_custom_call.1} parent=1 // pred_fallthru
      _
    %311 = vsyncpa [#allocation3], 1
    %312 = vsyncpa [#allocation6], 1
    %313 = vsyncpa [#allocation4], 1

</llo_original>
